<compile_context>
chip_gen: v5e
topology: v5e:2x2
jax: 0.10.0
libtpu: 0.0.40
codegen_flags: <defaults>
</compile_context>

<pallas_src>
import functools

import jax
import jax.numpy as jnp
from jax import lax
from jax.experimental import pallas as pl
from jax.experimental.pallas import tpu as pltpu

_LANE = 128     # lanes per vreg row
_SUB = 8        # sublanes per vreg
_TM_MAX = 2048  # rows per input block (2048*128 f32 = 1 MiB per input per block)


def _round_up(x, m):
    return ((x + m - 1) // m) * m


def _wasserstein_kernel(real_ref, fake_ref, out_ref, *, tm, bpc, n_rows, needs_mask):
    c = pl.program_id(0)   # core-split axis ("parallel")
    i = pl.program_id(1)   # reduction axis ("arbitrary")

    # Output block is resident across the reduction axis -> it is the accumulator.
    @pl.when(i == 0)
    def _():
        out_ref[...] = jnp.zeros_like(out_ref)

    # Fused difference; cast in-kernel (supports bf16 inputs with no HBM upcast copy).
    diff = fake_ref[...].astype(jnp.float32) - real_ref[...].astype(jnp.float32)

    if needs_mask:
        # Mask rows past the real data (partial boundary block / clamped extra blocks).
        block_id = c * bpc + i
        row = block_id * tm + lax.broadcasted_iota(jnp.int32, (tm, 1), 0)
        diff = jnp.where(row < n_rows, diff, 0.0)

    # Reduce (tm,128) -> (8,128) using only cross-vreg VPU adds (no XLU per step).
    partial = diff.reshape(tm // _SUB, _SUB, _LANE).sum(axis=0)
    out_ref[...] += partial.reshape(1, _SUB, _LANE)


def _to_rows(x):
    """Flatten row-major; pad (only if needed) to a whole number of 128-lane rows."""
    flat = x.reshape(-1)
    n = flat.shape[0]
    rem = n % _LANE
    if rem:
        flat = jnp.pad(flat, (0, _LANE - rem))
    return flat.reshape(-1, _LANE)


@jax.jit
def wasserstein_loss(real_output, fake_output):
    assert real_output.shape == fake_output.shape, (
        "this kernel assumes real/fake discriminator outputs share a shape")

    n_elems = real_output.size
    real2d = _to_rows(real_output)
    fake2d = _to_rows(fake_output)
    n_rows = real2d.shape[0]

    tm = min(_TM_MAX, _round_up(n_rows, _SUB))
    n_blocks = pl.cdiv(n_rows, tm)
    # Split blocks across 2 TensorCores when there is enough work (v7x megacore);
    # a size-2 "parallel" axis is harmless (sequential) on single-TC chips.
    nc = 2 if n_blocks >= 2 else 1
    bpc = pl.cdiv(n_blocks, nc)
    needs_mask = (nc * bpc * tm) != n_rows

    if nc * bpc == n_blocks:
        def in_map(c, i):
            return (c * bpc + i, 0)
    else:
        # Clamp out-of-range block indices; those blocks are fully masked in-kernel.
        def in_map(c, i):
            return (jnp.minimum(c * bpc + i, n_blocks - 1), 0)

    kernel = functools.partial(
        _wasserstein_kernel, tm=tm, bpc=bpc, n_rows=n_rows, needs_mask=needs_mask)

    bytes_in = (real2d.size * real2d.dtype.itemsize
                + fake2d.size * fake2d.dtype.itemsize)
    cost = pl.CostEstimate(
        flops=2 * n_elems,
        transcendentals=0,
        bytes_accessed=bytes_in + nc * _SUB * _LANE * 4,
    )

    partials = pl.pallas_call(
        kernel,
        out_shape=jax.ShapeDtypeStruct((nc, _SUB, _LANE), jnp.float32),
        grid_spec=pltpu.PrefetchScalarGridSpec(
            num_scalar_prefetch=0,
            grid=(nc, bpc),
            in_specs=[
                pl.BlockSpec((tm, _LANE), in_map),
                pl.BlockSpec((tm, _LANE), in_map),
            ],
            out_specs=pl.BlockSpec((1, _SUB, _LANE), lambda c, i: (c, 0, 0)),
        ),
        compiler_params=pltpu.CompilerParams(
            dimension_semantics=("parallel", "arbitrary")),
        cost_estimate=cost,
    )(real2d, fake2d)

    return jnp.sum(partials) / jnp.float32(n_elems)


if __name__ == "__main__":
    # 1) Small discriminator-output-like tensors, NCHW, lane-aligned size.
    k1, k2 = jax.random.split(jax.random.PRNGKey(0))
    shape = (2, 4, 16, 16)
    real_output = jax.random.normal(k1, shape, dtype=jnp.float32)
    fake_output = jax.random.normal(k2, shape, dtype=jnp.float32)
    loss = wasserstein_loss(real_output, fake_output)
    jax.block_until_ready(loss)
    ref = jnp.mean(fake_output) - jnp.mean(real_output)
    assert jnp.allclose(loss, ref, atol=1e-6, rtol=1e-6), (loss, ref)

    # 2) Unaligned element count (exercises padding + in-kernel row mask).
    k3, k4 = jax.random.split(jax.random.PRNGKey(1))
    shape2 = (2, 3, 5, 7)
    real2 = jax.random.normal(k3, shape2, dtype=jnp.float32)
    fake2 = jax.random.normal(k4, shape2, dtype=jnp.float32)
    loss2 = wasserstein_loss(real2, fake2)
    jax.block_until_ready(loss2)
    ref2 = jnp.mean(fake2) - jnp.mean(real2)
    assert jnp.allclose(loss2, ref2, atol=1e-6, rtol=1e-6), (loss2, ref2)

    # 3) bf16 inputs, multiple blocks (exercises 2-core split, clamp, in-kernel cast).
    k5, k6 = jax.random.split(jax.random.PRNGKey(2))
    shape3 = (6, 16, 64, 64)
    real3 = jax.random.normal(k5, shape3, dtype=jnp.bfloat16)
    fake3 = jax.random.normal(k6, shape3, dtype=jnp.bfloat16)
    loss3 = wasserstein_loss(real3, fake3)
    jax.block_until_ready(loss3)
    ref3 = (jnp.mean(fake3.astype(jnp.float32))
            - jnp.mean(real3.astype(jnp.float32)))
    assert jnp.allclose(loss3, ref3, atol=1e-5, rtol=1e-5), (loss3, ref3)

    print("KERNEL_OK")
</pallas_src>

<mosaic_0001>
module attributes {stable_mosaic.version = 11 : i64} {
  func.func @_wasserstein_kernel(%arg0: i32, %arg1: i32, %arg2: memref<16x128xf32, #tpu.memory_space<vmem>>, %arg3: memref<16x128xf32, #tpu.memory_space<vmem>>, %arg4: memref<1x8x128xf32, #tpu.memory_space<vmem>>) attributes {dimension_semantics = [#tpu.dimension_semantics<parallel>, #tpu.dimension_semantics<arbitrary>], iteration_bounds = array<i64: 1, 1>, scalar_prefetch = 0 : i64, scratch_operands = 0 : i64, tpu.core_type = #tpu.core_type<tc>, window_params = [{transform_indices = @transform_0, window_bounds = array<i64: 16, 128>}, {transform_indices = @transform_1, window_bounds = array<i64: 16, 128>}, {transform_indices = @transform_2, window_bounds = array<i64: 1, 8, 128>}]} {
    %c0_i32 = arith.constant 0 : i32
    %0 = arith.cmpi eq, %arg1, %c0_i32 : i32
    %1 = arith.extui %0 : i1 to i32
    %c0_i32_0 = arith.constant 0 : i32
    %2 = arith.cmpi ne, %1, %c0_i32_0 : i32
    scf.if %2 {
      %cst_10 = arith.constant 0.000000e+00 : f32
      %12 = vector.broadcast %cst_10 : f32 to vector<1x8x128xf32>
      %c0_11 = arith.constant 0 : index
      %c0_12 = arith.constant 0 : index
      %c0_13 = arith.constant 0 : index
      %13 = vector.load %arg4[%c0_11, %c0_12, %c0_13] : memref<1x8x128xf32, #tpu.memory_space<vmem>>, vector<1x8x128xf32>
      tpu.vector_store %arg4[%c0_11, %c0_12, %c0_13], %12 {strides = array<i32>} : memref<1x8x128xf32, #tpu.memory_space<vmem>>, vector<1x8x128xf32>,
    } else {
    }
    %c0 = arith.constant 0 : index
    %c0_1 = arith.constant 0 : index
    %3 = vector.load %arg3[%c0, %c0_1] : memref<16x128xf32, #tpu.memory_space<vmem>>, vector<16x128xf32>
    %c0_2 = arith.constant 0 : index
    %c0_3 = arith.constant 0 : index
    %4 = vector.load %arg2[%c0_2, %c0_3] : memref<16x128xf32, #tpu.memory_space<vmem>>, vector<16x128xf32>
    %5 = arith.subf %3, %4 : vector<16x128xf32>
    %6 = vector.shape_cast %5 : vector<16x128xf32> to vector<2x8x128xf32>
    %cst = arith.constant dense<0.000000e+00> : vector<8x128xf32>
    %7 = vector.multi_reduction <add>, %6, %cst [0] : vector<2x8x128xf32> to vector<8x128xf32>
    %c0_4 = arith.constant 0 : index
    %c0_5 = arith.constant 0 : index
    %c0_6 = arith.constant 0 : index
    %8 = vector.load %arg4[%c0_4, %c0_5, %c0_6] : memref<1x8x128xf32, #tpu.memory_space<vmem>>, vector<1x8x128xf32>
    %9 = vector.shape_cast %7 : vector<8x128xf32> to vector<1x8x128xf32>
    %10 = arith.addf %8, %9 : vector<1x8x128xf32>
    %c0_7 = arith.constant 0 : index
    %c0_8 = arith.constant 0 : index
    %c0_9 = arith.constant 0 : index
    %11 = vector.load %arg4[%c0_7, %c0_8, %c0_9] : memref<1x8x128xf32, #tpu.memory_space<vmem>>, vector<1x8x128xf32>
    tpu.vector_store %arg4[%c0_7, %c0_8, %c0_9], %10 {strides = array<i32>} : memref<1x8x128xf32, #tpu.memory_space<vmem>>, vector<1x8x128xf32>,
    return
  }
  func.func @transform_0(%arg0: i32, %arg1: i32) -> (i32, i32) {
    %c1_i32 = arith.constant 1 : i32
    %0 = arith.muli %arg0, %c1_i32 : i32
    %1 = arith.addi %0, %arg1 : i32
    %c0_i32 = arith.constant 0 : i32
    %c0_i32_0 = arith.constant 0 : i32
    return %1, %c0_i32 : i32, i32
  }
  func.func @transform_1(%arg0: i32, %arg1: i32) -> (i32, i32) {
    %c1_i32 = arith.constant 1 : i32
    %0 = arith.muli %arg0, %c1_i32 : i32
    %1 = arith.addi %0, %arg1 : i32
    %c0_i32 = arith.constant 0 : i32
    %c0_i32_0 = arith.constant 0 : i32
    return %1, %c0_i32 : i32, i32
  }
  func.func @transform_2(%arg0: i32, %arg1: i32) -> (i32, i32, i32) {
    %c0_i32 = arith.constant 0 : i32
    %c0_i32_0 = arith.constant 0 : i32
    %c0_i32_1 = arith.constant 0 : i32
    return %arg0, %c0_i32, %c0_i32_0 : i32, i32, i32
  }
}

</mosaic_0001>

<llo_original>
// kernel: wasserstein_loss.1
$region0: #{wasserstein_loss.1}
  #allocation0 [shape = 'u32[]', space=smem, size = 0x4, offset = 0x4, fixed_abs, tag = 'smem constant byte address 0x4 - core index']
  #allocation1 [shape = 'u32[72,128]{1,0:T(1,128)}', space=vmem, size = 0x9000, scoped, tag = 'internal scratch']
  %s0 = inlined_call_operand.vmem [shape: f32[16,128], index: 0, kind: input, shape index: {}]
  %s1 = inlined_call_operand.vmem [shape: f32[16,128], index: 1, kind: input, shape index: {}]
  %s2 = inlined_call_operand.vmem [shape: f32[1,8,128], index: 2, kind: output, shape index: {}]
  %s3 = sld [smem:[#allocation0]]
  $region22: #{wasserstein_loss.1} parent=0
    _
  %s5 = ssub.s32 1, %s3
  %s6 = scalar_select 0, %s5, %s3
  // Predicated region
  $region2: #{wasserstein_loss.1} parent=0 // pred_check
    _
  $region3: #{wasserstein_loss.1} parent=0 // pred_check_branch
    %8 = sbr.rel (0) target = $region5
  $region4: #{wasserstein_loss.1} parent=0 // pred_region
    %s9 = sadd.s32 0, 0
    %s10 = smul.u32 2, %s9
    %p11 = scmp.lt.s32.totalorder %s10, 1
    %s12 = scalar_select %p11, %s10, 1
    %s13 = smul.addr %s12, 8
    %s14 = scalar_lea.vmem %s0, %s13
    %s15 = sadd.s32 0, 0
    %s16 = smul.u32 2, %s15
  $region5: #{wasserstein_loss.1} parent=0 // pred_fallthru
    _
  // Predicated region
  $region6: #{wasserstein_loss.1} parent=0 // pred_check
    _
  $region7: #{wasserstein_loss.1} parent=0 // pred_check_branch
    %18 = sbr.rel (0) target = $region9
  $region8: #{wasserstein_loss.1} parent=0 // pred_region
    %s19 = sadd.s32 0, 0
    %s20 = smul.u32 2, %s19
    %p21 = scmp.lt.s32.totalorder %s20, 1
    %s22 = scalar_select %p21, %s20, 1
    %s23 = smul.addr %s22, 8
    %s24 = scalar_lea.vmem %s1, %s23
    %s25 = sadd.s32 0, 0
    %s26 = smul.u32 2, %s25
  $region9: #{wasserstein_loss.1} parent=0 // pred_fallthru
    _
  %s27 = sadd.s32 0, 0
  %s28 = smul.u32 2, %s27
  %p29 = scmp.lt.s32.totalorder %s28, 1
  %s30 = scalar_select %p29, %s28, 1
  %s31 = smul.addr %s30, 8
  %s32 = scalar_lea.vmem %s0, %s31
  %s33 = sadd.s32 0, 0
  %s34 = smul.u32 2, %s33
  %p35 = scmp.lt.s32.totalorder %s34, 1
  %s36 = scalar_select %p35, %s34, 1
  %s37 = smul.addr %s36, 8
  %s38 = scalar_lea.vmem %s1, %s37
  %s39 = sadd.s32 0, 0
  %s40 = smul.u32 2, %s39
  %p41 = scmp.lt.s32.totalorder %s40, 1
  %s42 = scalar_select %p41, %s40, 1
  %s43 = smul.addr %s42, 8
  %s44 = scalar_lea.vmem %s0, %s43
  %s45 = sadd.s32 0, 0
  %s46 = smul.u32 2, %s45
  %s47 = sadd.s32 0, 0
  %s48 = smul.u32 2, %s47
  %p49 = scmp.lt.s32.totalorder %s48, 1
  %s50 = scalar_select %p49, %s48, 1
  %s51 = smul.addr %s50, 8
  %s52 = scalar_lea.vmem %s1, %s51
  %s53 = sadd.s32 0, 0
  %s54 = smul.u32 2, %s53
  %p55 = scmp.eq.s32.totalorder 0, 0
  // Predicated region
  $region10: #{wasserstein_loss.1} parent=0 // pred_check
    %p56 = pneg %p55
  $region11: #{wasserstein_loss.1} parent=0 // pred_check_branch
    %58 = sbr.rel (%p56) target = $region13
  $region12: #{wasserstein_loss.1} parent=0 // pred_region
    %59 = vst [vmem:[%s2] sm:$0xff] 0.0
  $region13: #{wasserstein_loss.1} parent=0 // pred_fallthru
    _
  %v60 = vld [vmem:[%s52] sm:$0xff]
  %v61 = vld [vmem:[%s52 + $0x8] sm:$0xff]
  %v62 = vld [vmem:[%s44] sm:$0xff]
  %v63 = vld [vmem:[%s44 + $0x8] sm:$0xff]
  %v64 = vsub.f32 %v60, %v62
  %v65 = vsub.f32 %v61, %v63
  %v66 = vadd.f32 %v64, %v65
  %v67 = vld [vmem:[%s2] sm:$0xff]
  %v68 = vadd.f32 %v67, %v66
  %69 = vst [vmem:[%s2] sm:$0xff] %v68
  // Predicated region
  $region14: #{wasserstein_loss.1} parent=0 // pred_check
    _
  $region15: #{wasserstein_loss.1} parent=0 // pred_check_branch
    %71 = sbr.rel (0) target = $region17
  $region16: #{wasserstein_loss.1} parent=0 // pred_region
    _
  $region17: #{wasserstein_loss.1} parent=0 // pred_fallthru
    _
  // Predicated region
  $region18: #{wasserstein_loss.1} parent=0 // pred_check
    _
  $region19: #{wasserstein_loss.1} parent=0 // pred_check_branch
    %73 = sbr.rel (0) target = $region21
  $region20: #{wasserstein_loss.1} parent=0 // pred_region
    _
  $region21: #{wasserstein_loss.1} parent=0 // pred_fallthru
    _

</llo_original>
